<compile_context>
chip_gen: v5e
topology: v5e:2x2
jax: 0.10.0
libtpu: 0.0.40
codegen_flags: <defaults>
</compile_context>

<pallas_src>
import functools
import numpy as np
import jax
import jax.numpy as jnp
from jax.experimental import pallas as pl
from jax.experimental.pallas import tpu as pltpu

BN_EPS = 1e-5


def _make_tap_masks(H, W, Cin):
    """(9*Cin, H*W) f32 0/1 masks; rows [t*Cin:(t+1)*Cin) flag the destination
    positions whose tap-t source pixel lies inside the image (SAME padding)."""
    S = H * W
    r = np.repeat(np.arange(H), W)
    c = np.tile(np.arange(W), H)
    m = np.zeros((9, S), np.float32)
    for ky in range(3):
        for kx in range(3):
            dy, dx = ky - 1, kx - 1
            valid = ((r + dy >= 0) & (r + dy < H) &
                     (c + dx >= 0) & (c + dx < W))
            m[ky * 3 + kx] = valid.astype(np.float32)
    return jnp.asarray(np.repeat(m, Cin, axis=0))


def _conv_taps(x_ref, w_ref, m_ref, xs_ref, width):
    """3x3 SAME conv of one batch element in flattened-spatial layout.

    x_ref : (1, Cin, S)      S = H*W on the lane axis
    w_ref : (Cout, 9*Cin)    taps in (ky*3+kx)-major, ci-minor order
    m_ref : (9*Cin, S)       0/1 boundary masks matching the stack layout
    xs_ref: (9*Cin, S) VMEM  im2col stack scratch (fully overwritten each step)
    returns (Cout, S) float32 pre-activation (no bias).
    """
    Cin, S = x_ref.shape[1], x_ref.shape[2]
    x2 = x_ref[0]                                          # (Cin, S)
    for ky in range(3):
        for kx in range(3):
            t = ky * 3 + kx
            delta = (ky - 1) * width + (kx - 1)            # flattened src offset
            tap = x2 if delta == 0 else pltpu.roll(x2, (-delta) % S, 1)
            xs_ref[t * Cin:(t + 1) * Cin, :] = tap
    stack = xs_ref[...] * m_ref[...]                       # zero invalid taps
    # TODO(synk): with Cin/Cout this small the (8,36)@(36,S) matmul fills <1% of
    # the MXU; a VPU shifted-FMA variant would skip the MXU entirely. For large
    # production channels, cast x/w to bf16 on v6e/v7x (keep f32 accumulation).
    return jnp.dot(w_ref[...], stack, preferred_element_type=jnp.float32)


# ----------------- Kernel A: conv + bias + ReLU (no BN path) -----------------
def _conv_bias_relu_kernel(x_ref, w_ref, b_ref, m_ref, y_ref, xs_ref, *, width):
    acc = _conv_taps(x_ref, w_ref, m_ref, xs_ref, width)   # (Cout, S) f32
    y_ref[0] = jnp.maximum(acc + b_ref[...], 0.0).astype(y_ref.dtype)


# -------- Kernel B: conv (bias-free) + per-batch partial channel stats --------
def _conv_stats_kernel(x_ref, w_ref, m_ref, y_ref, sum_ref, sq_ref, xs_ref, *,
                       width):
    acc = _conv_taps(x_ref, w_ref, m_ref, xs_ref, width)   # (Cout, S) f32
    y_ref[0] = acc.astype(y_ref.dtype)
    sum_ref[0] = jnp.sum(acc, axis=1, keepdims=True)       # (Cout, 1)
    sq_ref[0] = jnp.sum(acc * acc, axis=1, keepdims=True)  # (Cout, 1)


# ------------- Kernel C: folded BN affine + ReLU, in place (aliased) -------------
def _affine_relu_kernel(y_ref, scale_ref, shift_ref, o_ref):
    o_ref[0] = jnp.maximum(y_ref[0] * scale_ref[...] + shift_ref[...],
                           0.0).astype(o_ref.dtype)


# ---------------------------------- Wrapper ----------------------------------
def encoder_layer(x_nchw, w_oihw, bias, gamma, beta, enable_bn):
    """x_nchw: (N, Cin, H, W) f32; w_oihw: (Cout, Cin, 3, 3) -> (N, Cout, H, W)."""
    N, Cin, H, W = x_nchw.shape
    Cout = w_oihw.shape[0]
    S = H * W

    x = x_nchw.reshape(N, Cin, S)                           # free reshape (NCHW)
    w_flat = jnp.transpose(w_oihw, (0, 2, 3, 1)).reshape(Cout, 9 * Cin)
    masks = _make_tap_masks(H, W, Cin)                      # (9*Cin, S)

    x_spec = pl.BlockSpec((1, Cin, S), lambda n: (n, 0, 0))
    w_spec = pl.BlockSpec((Cout, 9 * Cin), lambda n: (0, 0))
    m_spec = pl.BlockSpec((9 * Cin, S), lambda n: (0, 0))
    b_spec = pl.BlockSpec((Cout, 1), lambda n: (0, 0))
    y_spec = pl.BlockSpec((1, Cout, S), lambda n: (n, 0, 0))
    stat_spec = pl.BlockSpec((1, Cout, 1), lambda n: (n, 0, 0))
    scratch = [pltpu.VMEM((9 * Cin, S), jnp.float32)]
    cparams = pltpu.CompilerParams(dimension_semantics=("parallel",))

    # TODO(synk): at production H/W, add an H-strip grid axis (2-row halo via an
    # extra roll window), mark it "parallel" too, and size the strip against the
    # per-generation scoped VMEM (v7x: 64 MiB) with vmem_limit_bytes.

    if not enable_bn:
        y = pl.pallas_call(
            functools.partial(_conv_bias_relu_kernel, width=W),
            out_shape=jax.ShapeDtypeStruct((N, Cout, S), jnp.float32),
            grid=(N,),
            in_specs=[x_spec, w_spec, b_spec, m_spec],
            out_specs=y_spec,
            scratch_shapes=scratch,
            compiler_params=cparams,
        )(x, w_flat, bias.reshape(Cout, 1), masks)
        return y.reshape(N, Cout, H, W)

    # Pass 1: bias-free conv (bias cancels under BN) + per-batch partial stats.
    y, csum, csq = pl.pallas_call(
        functools.partial(_conv_stats_kernel, width=W),
        out_shape=(
            jax.ShapeDtypeStruct((N, Cout, S), jnp.float32),
            jax.ShapeDtypeStruct((N, Cout, 1), jnp.float32),
            jax.ShapeDtypeStruct((N, Cout, 1), jnp.float32),
        ),
        grid=(N,),
        in_specs=[x_spec, w_spec, m_spec],
        out_specs=(y_spec, stat_spec, stat_spec),
        scratch_shapes=scratch,
        compiler_params=cparams,
    )(x, w_flat, masks)

    # Tiny JAX glue: batch stats -> folded per-channel affine (training-mode BN).
    # TODO(synk): E[y^2]-E[y]^2 can lose precision for large-mean activations;
    # switch to a centered / Welford partial-stat kernel for robustness at scale.
    count = jnp.float32(N * S)
    mean = jnp.sum(csum, axis=0) / count                    # (Cout, 1)
    var = jnp.maximum(jnp.sum(csq, axis=0) / count - mean * mean, 0.0)
    scale = gamma.reshape(Cout, 1) * jax.lax.rsqrt(var + BN_EPS)
    shift = beta.reshape(Cout, 1) - mean * scale

    # Pass 2: y <- max(y*scale + shift, 0), in place, lane-dense loads/stores.
    # TODO(synk): when N*Cout*S*4 fits VMEM, fold this into a second sweep of the
    # pass-1 pallas_call (keep y resident) to drop this HBM round trip entirely.
    p_spec = pl.BlockSpec((Cout, 1), lambda n: (0, 0))
    out = pl.pallas_call(
        _affine_relu_kernel,
        out_shape=jax.ShapeDtypeStruct((N, Cout, S), jnp.float32),
        grid=(N,),
        in_specs=[y_spec, p_spec, p_spec],
        out_specs=y_spec,
        input_output_aliases={0: 0},
        compiler_params=cparams,
    )(y, scale, shift)
    return out.reshape(N, Cout, H, W)


# ---------------------------- Reference (pure JAX) ----------------------------
def _reference(x_nchw, w_oihw, bias, gamma, beta, enable_bn):
    y = jax.lax.conv_general_dilated(
        x_nchw, w_oihw, window_strides=(1, 1), padding=((1, 1), (1, 1)),
        dimension_numbers=("NCHW", "OIHW", "NCHW"))
    y = y + bias[None, :, None, None]
    if enable_bn:
        mean = jnp.mean(y, axis=(0, 2, 3), keepdims=True)
        var = jnp.mean((y - mean) ** 2, axis=(0, 2, 3), keepdims=True)
        y = ((y - mean) * jax.lax.rsqrt(var + BN_EPS)
             * gamma[None, :, None, None] + beta[None, :, None, None])
    return jnp.maximum(y, 0.0)


if __name__ == "__main__":
    N, Cin, Cout, H, W = 2, 4, 8, 16, 16
    key = jax.random.PRNGKey(0)
    kx, kw, kb = jax.random.split(key, 3)

    x = jax.random.normal(kx, (N, Cin, H, W), dtype=jnp.float32)
    w = jax.random.normal(kw, (Cout, Cin, 3, 3), dtype=jnp.float32) * 0.1
    b = jax.random.normal(kb, (Cout,), dtype=jnp.float32) * 0.1
    gamma = jnp.ones((Cout,), jnp.float32)   # BatchNorm2d default init
    beta = jnp.zeros((Cout,), jnp.float32)

    ok = True
    for enable_bn in (True, False):
        out = jax.block_until_ready(encoder_layer(x, w, b, gamma, beta, enable_bn))
        ref = jax.block_until_ready(_reference(x, w, b, gamma, beta, enable_bn))
        ok = ok and bool(np.allclose(np.asarray(out), np.asarray(ref),
                                     atol=1e-4, rtol=1e-4))
    assert ok, "Pallas EncoderLayer mismatch vs reference"
    print("KERNEL_OK")
</pallas_src>

<mosaic_0001>
module attributes {stable_mosaic.version = 11 : i64} {
  func.func @_conv_stats_kernel(%arg0: i32, %arg1: memref<1x4x256xf32, #tpu.memory_space<vmem>>, %arg2: memref<8x36xf32, #tpu.memory_space<vmem>>, %arg3: memref<36x256xf32, #tpu.memory_space<vmem>>, %arg4: memref<1x8x256xf32, #tpu.memory_space<vmem>>, %arg5: memref<1x8x1xf32, #tpu.memory_space<vmem>>, %arg6: memref<1x8x1xf32, #tpu.memory_space<vmem>>, %arg7: memref<36x256xf32, #tpu.memory_space<vmem>>) attributes {dimension_semantics = [#tpu.dimension_semantics<parallel>], iteration_bounds = array<i64: 2>, scalar_prefetch = 0 : i64, scratch_operands = 1 : i64, tpu.core_type = #tpu.core_type<tc>, window_params = [{transform_indices = @transform_0, window_bounds = array<i64: 1, 4, 256>}, {pipeline_mode = #tpu.pipeline_mode<synchronous>, transform_indices = @transform_1, window_bounds = array<i64: 8, 36>}, {pipeline_mode = #tpu.pipeline_mode<synchronous>, transform_indices = @transform_2, window_bounds = array<i64: 36, 256>}, {transform_indices = @transform_3, window_bounds = array<i64: 1, 8, 256>}, {transform_indices = @transform_4, window_bounds = array<i64: 1, 8, 1>}, {transform_indices = @transform_5, window_bounds = array<i64: 1, 8, 1>}]} {
    %c0 = arith.constant 0 : index
    %c0_0 = arith.constant 0 : index
    %c0_1 = arith.constant 0 : index
    %0 = vector.load %arg1[%c0, %c0_0, %c0_1] : memref<1x4x256xf32, #tpu.memory_space<vmem>>, vector<1x4x256xf32>
    %1 = vector.shape_cast %0 : vector<1x4x256xf32> to vector<4x256xf32>
    %c17_i32 = arith.constant 17 : i32
    %2 = tpu.dynamic_rotate %1 by %c17_i32 dim 1 : vector<4x256xf32>, i32 -> vector<4x256xf32>
    %c0_2 = arith.constant 0 : index
    %c0_3 = arith.constant 0 : index
    %3 = vector.load %arg7[%c0_2, %c0_3] : memref<36x256xf32, #tpu.memory_space<vmem>>, vector<4x256xf32>
    tpu.vector_store %arg7[%c0_2, %c0_3], %2 {strides = array<i32>} : memref<36x256xf32, #tpu.memory_space<vmem>>, vector<4x256xf32>,
    %c16_i32 = arith.constant 16 : i32
    %4 = tpu.dynamic_rotate %1 by %c16_i32 dim 1 : vector<4x256xf32>, i32 -> vector<4x256xf32>
    %c4 = arith.constant 4 : index
    %c0_4 = arith.constant 0 : index
    %5 = vector.load %arg7[%c4, %c0_4] : memref<36x256xf32, #tpu.memory_space<vmem>>, vector<4x256xf32>
    tpu.vector_store %arg7[%c4, %c0_4], %4 {strides = array<i32>} : memref<36x256xf32, #tpu.memory_space<vmem>>, vector<4x256xf32>,
    %c15_i32 = arith.constant 15 : i32
    %6 = tpu.dynamic_rotate %1 by %c15_i32 dim 1 : vector<4x256xf32>, i32 -> vector<4x256xf32>
    %c8 = arith.constant 8 : index
    %c0_5 = arith.constant 0 : index
    %7 = vector.load %arg7[%c8, %c0_5] : memref<36x256xf32, #tpu.memory_space<vmem>>, vector<4x256xf32>
    tpu.vector_store %arg7[%c8, %c0_5], %6 {strides = array<i32>} : memref<36x256xf32, #tpu.memory_space<vmem>>, vector<4x256xf32>,
    %c1_i32 = arith.constant 1 : i32
    %8 = tpu.dynamic_rotate %1 by %c1_i32 dim 1 : vector<4x256xf32>, i32 -> vector<4x256xf32>
    %c12 = arith.constant 12 : index
    %c0_6 = arith.constant 0 : index
    %9 = vector.load %arg7[%c12, %c0_6] : memref<36x256xf32, #tpu.memory_space<vmem>>, vector<4x256xf32>
    tpu.vector_store %arg7[%c12, %c0_6], %8 {strides = array<i32>} : memref<36x256xf32, #tpu.memory_space<vmem>>, vector<4x256xf32>,
    %c16 = arith.constant 16 : index
    %c0_7 = arith.constant 0 : index
    %10 = vector.load %arg7[%c16, %c0_7] : memref<36x256xf32, #tpu.memory_space<vmem>>, vector<4x256xf32>
    tpu.vector_store %arg7[%c16, %c0_7], %1 {strides = array<i32>} : memref<36x256xf32, #tpu.memory_space<vmem>>, vector<4x256xf32>,
    %c255_i32 = arith.constant 255 : i32
    %11 = tpu.dynamic_rotate %1 by %c255_i32 dim 1 : vector<4x256xf32>, i32 -> vector<4x256xf32>
    %c20 = arith.constant 20 : index
    %c0_8 = arith.constant 0 : index
    %12 = vector.load %arg7[%c20, %c0_8] : memref<36x256xf32, #tpu.memory_space<vmem>>, vector<4x256xf32>
    tpu.vector_store %arg7[%c20, %c0_8], %11 {strides = array<i32>} : memref<36x256xf32, #tpu.memory_space<vmem>>, vector<4x256xf32>,
    %c241_i32 = arith.constant 241 : i32
    %13 = tpu.dynamic_rotate %1 by %c241_i32 dim 1 : vector<4x256xf32>, i32 -> vector<4x256xf32>
    %c24 = arith.constant 24 : index
    %c0_9 = arith.constant 0 : index
    %14 = vector.load %arg7[%c24, %c0_9] : memref<36x256xf32, #tpu.memory_space<vmem>>, vector<4x256xf32>
    tpu.vector_store %arg7[%c24, %c0_9], %13 {strides = array<i32>} : memref<36x256xf32, #tpu.memory_space<vmem>>, vector<4x256xf32>,
    %c240_i32 = arith.constant 240 : i32
    %15 = tpu.dynamic_rotate %1 by %c240_i32 dim 1 : vector<4x256xf32>, i32 -> vector<4x256xf32>
    %c28 = arith.constant 28 : index
    %c0_10 = arith.constant 0 : index
    %16 = vector.load %arg7[%c28, %c0_10] : memref<36x256xf32, #tpu.memory_space<vmem>>, vector<4x256xf32>
    tpu.vector_store %arg7[%c28, %c0_10], %15 {strides = array<i32>} : memref<36x256xf32, #tpu.memory_space<vmem>>, vector<4x256xf32>,
    %c239_i32 = arith.constant 239 : i32
    %17 = tpu.dynamic_rotate %1 by %c239_i32 dim 1 : vector<4x256xf32>, i32 -> vector<4x256xf32>
    %c32 = arith.constant 32 : index
    %c0_11 = arith.constant 0 : index
    %18 = vector.load %arg7[%c32, %c0_11] : memref<36x256xf32, #tpu.memory_space<vmem>>, vector<4x256xf32>
    tpu.vector_store %arg7[%c32, %c0_11], %17 {strides = array<i32>} : memref<36x256xf32, #tpu.memory_space<vmem>>, vector<4x256xf32>,
    %c0_12 = arith.constant 0 : index
    %c0_13 = arith.constant 0 : index
    %19 = vector.load %arg7[%c0_12, %c0_13] : memref<36x256xf32, #tpu.memory_space<vmem>>, vector<36x256xf32>
    %c0_14 = arith.constant 0 : index
    %c0_15 = arith.constant 0 : index
    %20 = vector.load %arg3[%c0_14, %c0_15] : memref<36x256xf32, #tpu.memory_space<vmem>>, vector<36x256xf32>
    %21 = arith.mulf %19, %20 : vector<36x256xf32>
    %c0_16 = arith.constant 0 : index
    %c0_17 = arith.constant 0 : index
    %22 = vector.load %arg2[%c0_16, %c0_17] : memref<8x36xf32, #tpu.memory_space<vmem>>, vector<8x36xf32>
    %cst = arith.constant dense<0.000000e+00> : vector<8x256xf32>
    %23 = tpu.matmul %22, %21, %cst {dimension_numbers = #tpu.dot_dimension_numbers<[1], [0], [0], [1], [0, 0, 1, 1], [], []>} : vector<8x36xf32>, vector<36x256xf32>, vector<8x256xf32> -> vector<8x256xf32>
    %c0_18 = arith.constant 0 : index
    %c0_19 = arith.constant 0 : index
    %c0_20 = arith.constant 0 : index
    %24 = vector.load %arg4[%c0_18, %c0_19, %c0_20] : memref<1x8x256xf32, #tpu.memory_space<vmem>>, vector<1x8x256xf32>
    %25 = vector.shape_cast %24 : vector<1x8x256xf32> to vector<8x256xf32>
    %26 = vector.shape_cast %23 : vector<8x256xf32> to vector<1x8x256xf32>
    tpu.vector_store %arg4[%c0_18, %c0_19, %c0_20], %26 {strides = array<i32>} : memref<1x8x256xf32, #tpu.memory_space<vmem>>, vector<1x8x256xf32>,
    %cst_21 = arith.constant dense<0.000000e+00> : vector<8xf32>
    %27 = vector.multi_reduction <add>, %23, %cst_21 [1] : vector<8x256xf32> to vector<8xf32>
    %28 = vector.shape_cast %27 : vector<8xf32> to vector<8x1xf32>
    %c0_22 = arith.constant 0 : index
    %c0_23 = arith.constant 0 : index
    %c0_24 = arith.constant 0 : index
    %29 = vector.load %arg5[%c0_22, %c0_23, %c0_24] : memref<1x8x1xf32, #tpu.memory_space<vmem>>, vector<1x8x1xf32>
    %30 = vector.shape_cast %29 : vector<1x8x1xf32> to vector<8x1xf32>
    %31 = vector.shape_cast %28 : vector<8x1xf32> to vector<1x8x1xf32>
    tpu.vector_store %arg5[%c0_22, %c0_23, %c0_24], %31 {strides = array<i32>} : memref<1x8x1xf32, #tpu.memory_space<vmem>>, vector<1x8x1xf32>,
    %32 = arith.mulf %23, %23 : vector<8x256xf32>
    %cst_25 = arith.constant dense<0.000000e+00> : vector<8xf32>
    %33 = vector.multi_reduction <add>, %32, %cst_25 [1] : vector<8x256xf32> to vector<8xf32>
    %34 = vector.shape_cast %33 : vector<8xf32> to vector<8x1xf32>
    %c0_26 = arith.constant 0 : index
    %c0_27 = arith.constant 0 : index
    %c0_28 = arith.constant 0 : index
    %35 = vector.load %arg6[%c0_26, %c0_27, %c0_28] : memref<1x8x1xf32, #tpu.memory_space<vmem>>, vector<1x8x1xf32>
    %36 = vector.shape_cast %35 : vector<1x8x1xf32> to vector<8x1xf32>
    %37 = vector.shape_cast %34 : vector<8x1xf32> to vector<1x8x1xf32>
    tpu.vector_store %arg6[%c0_26, %c0_27, %c0_28], %37 {strides = array<i32>} : memref<1x8x1xf32, #tpu.memory_space<vmem>>, vector<1x8x1xf32>,
    return
  }
  func.func @transform_0(%arg0: i32) -> (i32, i32, i32) {
    %c0_i32 = arith.constant 0 : i32
    %c0_i32_0 = arith.constant 0 : i32
    %c0_i32_1 = arith.constant 0 : i32
    return %arg0, %c0_i32, %c0_i32_0 : i32, i32, i32
  }
  func.func @transform_1(%arg0: i32) -> (i32, i32) {
    %c0_i32 = arith.constant 0 : i32
    %c0_i32_0 = arith.constant 0 : i32
    %c0_i32_1 = arith.constant 0 : i32
    return %c0_i32, %c0_i32_0 : i32, i32
  }
  func.func @transform_2(%arg0: i32) -> (i32, i32) {
    %c0_i32 = arith.constant 0 : i32
    %c0_i32_0 = arith.constant 0 : i32
    %c0_i32_1 = arith.constant 0 : i32
    return %c0_i32, %c0_i32_0 : i32, i32
  }
  func.func @transform_3(%arg0: i32) -> (i32, i32, i32) {
    %c0_i32 = arith.constant 0 : i32
    %c0_i32_0 = arith.constant 0 : i32
    %c0_i32_1 = arith.constant 0 : i32
    return %arg0, %c0_i32, %c0_i32_0 : i32, i32, i32
  }
  func.func @transform_4(%arg0: i32) -> (i32, i32, i32) {
    %c0_i32 = arith.constant 0 : i32
    %c0_i32_0 = arith.constant 0 : i32
    %c0_i32_1 = arith.constant 0 : i32
    return %arg0, %c0_i32, %c0_i32_0 : i32, i32, i32
  }
  func.func @transform_5(%arg0: i32) -> (i32, i32, i32) {
    %c0_i32 = arith.constant 0 : i32
    %c0_i32_0 = arith.constant 0 : i32
    %c0_i32_1 = arith.constant 0 : i32
    return %arg0, %c0_i32, %c0_i32_0 : i32, i32, i32
  }
}

</mosaic_0001>

<llo_original>
// kernel: tpu_custom_call.1
$region0: #{tpu_custom_call.1}
  #allocation0 [shape = 'u32[]', space=smem, size = 0x4, offset = 0x4, fixed_abs, tag = 'smem constant byte address 0x4 - core index']
  #allocation1 [shape = 'u32[72,128]{1,0:T(1,128)}', space=vmem, size = 0x9000, scoped, tag = 'internal scratch']
  #allocation2 [shape = 'f32[36,256]{1,0:T(8,128)}', space=vmem, size = 0xa000, scoped, tag = 'scratch operand']
  %s0 = inlined_call_operand.hbm [shape: f32[2,4,256], index: 0, kind: input, shape index: {}]
  %s1 = inlined_call_operand.hbm [shape: f32[8,36], index: 1, kind: input, shape index: {}]
  %s2 = inlined_call_operand.hbm [shape: f32[36,256], index: 2, kind: input, shape index: {}]
  %s3 = inlined_call_operand.hbm [shape: f32[2,8,256], index: 3, kind: output, shape index: {0}]
  %s4 = inlined_call_operand.vmem [shape: f32[2,8,1], index: 4, kind: output, shape index: {1}]
  %s5 = inlined_call_operand.vmem [shape: f32[2,8,1], index: 5, kind: output, shape index: {2}]
  %6 = xla_tuple %s3, %s4, %s5
  %s7 = sld [smem:[#allocation0]]
  $region73: #{tpu_custom_call.1} parent=0
    _
  %s9 = ssub.s32 1, %s7
  %s10 = scalar_select 0, %s9, %s7
  $region1: #{tpu_custom_call.1} parent=0
    #allocation3 [shape = 'u8[8192]{0}', space=vmem, size = 0x2000, scoped, tag = 'input window, operand 0']
    #allocation4 [shape = 's32[2]{0}', space=sflag, size = 0x8, scoped, tag = 'scoped memory for tpu_custom_call.1']
    #allocation5 [shape = 's32[2]{0}', space=sflag, size = 0x8, scoped, tag = 'scoped memory for tpu_custom_call.1']
    #allocation6 [shape = 'u8[4096]{0}', space=vmem, size = 0x1000, scoped, tag = 'input window, operand 1, single buffered']
    #allocation7 [shape = 's32[1]{0}', space=sflag, size = 0x4, scoped, tag = 'scoped memory for tpu_custom_call.1']
    #allocation8 [shape = 'u8[40960]{0}', space=vmem, size = 0xa000, scoped, tag = 'input window, operand 2, single buffered']
    #allocation9 [shape = 'u8[16384]{0}', space=vmem, size = 0x4000, scoped, tag = 'output window, operand 0']
    %11 = vsyncpa [#allocation4], 0
    %s12 = scalar_lea.sflag [#allocation4], 1
    %13 = vsyncpa %s12, 0
    %14 = vsyncpa [#allocation7], 0
    %15 = vsyncpa [#allocation5], 0
    %s16 = scalar_lea.sflag [#allocation5], 1
    %17 = vsyncpa %s16, 0
    loop: start=0, step=1, limit=4
    $region2: #{tpu_custom_call.1} parent=1 // loop_pre_header
      _
    $region3: #{tpu_custom_call.1} parent=1 // loop_header
      %s19 = sphi 0, %s23
      %p20 = scmp.ge.s32.totalorder %s19, 4
      %s29 = sphi 0, %s31
      %s32 = sphi 0, %s29
      %s33 = sphi 0, %s32
      %s49 = sphi 0, %s33
      %s53 = sphi 0, %s53
      %s55 = sphi 0, %s53
      %s56 = sphi 0, %s55
      %s70 = sphi 0, %s56
      %s74 = sphi 0, %s74
      %s76 = sphi 0, %s74
      %s77 = sphi 0, %s76
      %s91 = sphi 0, %s77
      %s97 = sphi 0, %s99
      %s100 = sphi 0, %s97
      %s101 = sphi 0, %s100
      %s117 = sphi 0, %s101
      %s123 = sphi 0, %s125
      %s126 = sphi 0, %s123
      %s127 = sphi 0, %s126
      %s143 = sphi 0, %s127
      %s149 = sphi 0, %s151
      %s152 = sphi 0, %s149
      %s153 = sphi 0, %s152
      %s169 = sphi 0, %s153
    $region4: #{tpu_custom_call.1} parent=1 // loop_header_branch
      %22 = sbr.rel (%p20) target = $region8
    $region5: #{tpu_custom_call.1} parent=1 // loop_body
      %s24 = ssub.s32 %s19, 1
      %s25 = ssub.s32 %s19, 2
      %s26 = sadd.s32 %s19, 1
      %s27 = ssub.s32 %s19, %s26
      %p28 = scmp.eq.s32.totalorder %s27, 0
      %s30 = sadd.s32 %s29, 1
      %s31 = scalar_select %p28, %s29, %s30
      %p34 = pneg %p28
      %p35 = scmp.eq.s32.totalorder %s19, 1
      %p36 = por %p34, %p35
      %p37 = scmp.ne.s32.totalorder %s29, %s32
      %p38 = scmp.eq.s32.totalorder %s19, 0
      %p39 = por %p37, %p38
      %p40 = scmp.ne.s32.totalorder %s29, %s32
      %p41 = scmp.eq.s32.totalorder %s24, 1
      %p42 = por %p40, %p41
      %p43 = scmp.ne.s32.totalorder %s32, %s33
      %p44 = scmp.eq.s32.totalorder %s24, 0
      %p45 = por %p43, %p44
      %p46 = scmp.ne.s32.totalorder %s32, %s33
      %p47 = scmp.eq.s32.totalorder %s25, 1
      %p48 = por %p46, %p47
      %p50 = scmp.ne.s32.totalorder %s33, %s49
      %p51 = scmp.eq.s32.totalorder %s25, 0
      %p52 = por %p50, %p51
      %s54 = sadd.s32 %s53, 1
      %p57 = scmp.eq.s32.totalorder %s19, 1
      %p58 = scmp.ne.s32.totalorder %s53, %s55
      %p59 = scmp.eq.s32.totalorder %s19, 0
      %p60 = por %p58, %p59
      %p61 = scmp.ne.s32.totalorder %s53, %s55
      %p62 = scmp.eq.s32.totalorder %s24, 1
      %p63 = por %p61, %p62
      %p64 = scmp.ne.s32.totalorder %s55, %s56
      %p65 = scmp.eq.s32.totalorder %s24, 0
      %p66 = por %p64, %p65
      %p67 = scmp.ne.s32.totalorder %s55, %s56
      %p68 = scmp.eq.s32.totalorder %s25, 1
      %p69 = por %p67, %p68
      %p71 = scmp.ne.s32.totalorder %s56, %s70
      %p72 = scmp.eq.s32.totalorder %s25, 0
      %p73 = por %p71, %p72
      %s75 = sadd.s32 %s74, 1
      %p78 = scmp.eq.s32.totalorder %s19, 1
      %p79 = scmp.ne.s32.totalorder %s74, %s76
      %p80 = scmp.eq.s32.totalorder %s19, 0
      %p81 = por %p79, %p80
      %p82 = scmp.ne.s32.totalorder %s74, %s76
      %p83 = scmp.eq.s32.totalorder %s24, 1
      %p84 = por %p82, %p83
      %p85 = scmp.ne.s32.totalorder %s76, %s77
      %p86 = scmp.eq.s32.totalorder %s24, 0
      %p87 = por %p85, %p86
      %p88 = scmp.ne.s32.totalorder %s76, %s77
      %p89 = scmp.eq.s32.totalorder %s25, 1
      %p90 = por %p88, %p89
      %p92 = scmp.ne.s32.totalorder %s77, %s91
      %p93 = scmp.eq.s32.totalorder %s25, 0
      %p94 = por %p92, %p93
      %s95 = ssub.s32 %s19, %s26
      %p96 = scmp.eq.s32.totalorder %s95, 0
      %s98 = sadd.s32 %s97, 1
      %s99 = scalar_select %p96, %s97, %s98
      %p102 = pneg %p96
      %p103 = scmp.eq.s32.totalorder %s19, 1
      %p104 = por %p102, %p103
      %p105 = scmp.ne.s32.totalorder %s97, %s100
      %p106 = scmp.eq.s32.totalorder %s19, 0
      %p107 = por %p105, %p106
      %p108 = scmp.ne.s32.totalorder %s97, %s100
      %p109 = scmp.eq.s32.totalorder %s24, 1
      %p110 = por %p108, %p109
      %p111 = scmp.ne.s32.totalorder %s100, %s101
      %p112 = scmp.eq.s32.totalorder %s24, 0
      %p113 = por %p111, %p112
      %p114 = scmp.ne.s32.totalorder %s100, %s101
      %p115 = scmp.eq.s32.totalorder %s25, 1
      %p116 = por %p114, %p115
      %p118 = scmp.ne.s32.totalorder %s101, %s117
      %p119 = scmp.eq.s32.totalorder %s25, 0
      %p120 = por %p118, %p119
      %s121 = ssub.s32 %s19, %s26
      %p122 = scmp.eq.s32.totalorder %s121, 0
      %s124 = sadd.s32 %s123, 1
      %s125 = scalar_select %p122, %s123, %s124
      %p128 = pneg %p122
      %p129 = scmp.eq.s32.totalorder %s19, 1
      %p130 = por %p128, %p129
      %p131 = scmp.ne.s32.totalorder %s123, %s126
      %p132 = scmp.eq.s32.totalorder %s19, 0
      %p133 = por %p131, %p132
      %p134 = scmp.ne.s32.totalorder %s123, %s126
      %p135 = scmp.eq.s32.totalorder %s24, 1
      %p136 = por %p134, %p135
      %p137 = scmp.ne.s32.totalorder %s126, %s127
      %p138 = scmp.eq.s32.totalorder %s24, 0
      %p139 = por %p137, %p138
      %p140 = scmp.ne.s32.totalorder %s126, %s127
      %p141 = scmp.eq.s32.totalorder %s25, 1
      %p142 = por %p140, %p141
      %p144 = scmp.ne.s32.totalorder %s127, %s143
      %p145 = scmp.eq.s32.totalorder %s25, 0
      %p146 = por %p144, %p145
      %s147 = ssub.s32 %s19, %s26
      %p148 = scmp.eq.s32.totalorder %s147, 0
      %s150 = sadd.s32 %s149, 1
      %s151 = scalar_select %p148, %s149, %s150
      %p154 = pneg %p148
      %p155 = scmp.eq.s32.totalorder %s19, 1
      %p156 = por %p154, %p155
      %p157 = scmp.ne.s32.totalorder %s149, %s152
      %p158 = scmp.eq.s32.totalorder %s19, 0
      %p159 = por %p157, %p158
      %p160 = scmp.ne.s32.totalorder %s149, %s152
      %p161 = scmp.eq.s32.totalorder %s24, 1
      %p162 = por %p160, %p161
      %p163 = scmp.ne.s32.totalorder %s152, %s153
      %p164 = scmp.eq.s32.totalorder %s24, 0
      %p165 = por %p163, %p164
      %p166 = scmp.ne.s32.totalorder %s152, %s153
      %p167 = scmp.eq.s32.totalorder %s25, 1
      %p168 = por %p166, %p167
      %p170 = scmp.ne.s32.totalorder %s153, %s169
      %p171 = scmp.eq.s32.totalorder %s25, 0
      %p172 = por %p170, %p171
      %p173 = scmp.le.s32.totalorder 1, %s19
      %p174 = scmp.lt.s32.totalorder %s19, 3
      %p175 = pnand %p173, %p174
      %p176 = pneg %p175
      // Predicated region
      $region9: #{tpu_custom_call.1} parent=5 // pred_check
        _
      $region10: #{tpu_custom_call.1} parent=5 // pred_check_branch
        %178 = sbr.rel (%p175) target = $region12
      $region11: #{tpu_custom_call.1} parent=5 // pred_region
        %s179 = ssub.s32 %s19, 1
        // Predicated region
        $region13: #{tpu_custom_call.1} parent=11 // pred_check
          %p180 = pneg %p66
        $region14: #{tpu_custom_call.1} parent=11 // pred_check_branch
          %182 = sbr.rel (%p180) target = $region16
        $region15: #{tpu_custom_call.1} parent=11 // pred_region
          %184 = vsyncadd [#allocation7], 0
          %s186 = sshll.u32 %s1, 4
          %s187 = int_to_ptr.hbm [resolvable:$true] %s186
          %s188 = sshll.u32 [#allocation6], 4
          %s189 = int_to_ptr.vmem [resolvable:$true] %s188
          %191 = dma.hbm_to_vmem [thread:$0]  %s187, 128, %s189, [#allocation7]
        $region16: #{tpu_custom_call.1} parent=11 // pred_fallthru
          _
        // Predicated region
        $region17: #{tpu_custom_call.1} parent=11 // pred_check
          %p192 = pneg %p87
        $region18: #{tpu_custom_call.1} parent=11 // pred_check_branch
          %194 = sbr.rel (%p192) target = $region20
        $region19: #{tpu_custom_call.1} parent=11 // pred_region
          %196 = vsyncadd [#allocation7], 0
          %s197 = sshll.u32 %s2, 4
          %s198 = int_to_ptr.hbm [resolvable:$true] %s197
          %s199 = sshll.u32 [#allocation8], 4
          %s200 = int_to_ptr.vmem [resolvable:$true] %s199
          %205 = dma.hbm_to_vmem [thread:$0]  %s198, 1280, %s200, [#allocation7], 256, 256, 16
        $region20: #{tpu_custom_call.1} parent=11 // pred_fallthru
          _
      $region12: #{tpu_custom_call.1} parent=5 // pred_fallthru
        _
      %p206 = scmp.lt.s32.totalorder %s19, 2
      // Predicated region
      $region21: #{tpu_custom_call.1} parent=5 // pred_check
        %p207 = pneg %p206
      $region22: #{tpu_custom_call.1} parent=5 // pred_check_branch
        %209 = sbr.rel (%p207) target = $region24
      $region23: #{tpu_custom_call.1} parent=5 // pred_region
        // Predicated region
        $region25: #{tpu_custom_call.1} parent=23 // pred_check
          %p210 = pneg %p39
        $region26: #{tpu_custom_call.1} parent=23 // pred_check_branch
          %212 = sbr.rel (%p210) target = $region28
        $region27: #{tpu_custom_call.1} parent=23 // pred_region
          %s213 = sand.u32 %s29, 1
          %s214 = scalar_lea.sflag [#allocation4], %s213
          %s215 = sand.u32 %s29, 1
          %s216 = smul.addr %s215, 8
          %s217 = scalar_lea.vmem [#allocation3], %s216
          %219 = vsyncadd %s214, 0
          %s220 = smul.addr %s19, 2
          %s221 = smul.addr %s220, 4
          %s222 = scalar_lea.hbm %s0, %s221
          %s224 = sshll.u32 %s222, 4
          %s225 = int_to_ptr.hbm [resolvable:$true] %s224
          %s226 = sshll.u32 %s217, 4
          %s227 = int_to_ptr.vmem [resolvable:$true] %s226
          %229 = dma.hbm_to_vmem [thread:$0]  %s225, 128, %s227, %s214
        $region28: #{tpu_custom_call.1} parent=23 // pred_fallthru
          _
      $region24: #{tpu_custom_call.1} parent=5 // pred_fallthru
        _
      %p230 = scmp.le.s32.totalorder 1, %s19
      %p231 = scmp.lt.s32.totalorder %s19, 3
      %p232 = pnand %p230, %p231
      %p233 = pneg %p232
      // Predicated region
      $region29: #{tpu_custom_call.1} parent=5 // pred_check
        _
      $region30: #{tpu_custom_call.1} parent=5 // pred_check_branch
        %235 = sbr.rel (%p232) target = $region32
      $region31: #{tpu_custom_call.1} parent=5 // pred_region
        %s236 = ssub.s32 %s19, 1
        %s237 = sand.u32 %s32, 1
        %s238 = scalar_lea.sflag [#allocation4], %s237
        %s239 = sand.u32 %s32, 1
        %s240 = smul.addr %s239, 8
        %s241 = scalar_lea.vmem [#allocation3], %s240
        // Predicated region
        $region33: #{tpu_custom_call.1} parent=31 // pred_check
          %p242 = pneg %p45
        $region34: #{tpu_custom_call.1} parent=31 // pred_check_branch
          %244 = sbr.rel (%p242) target = $region36
        $region35: #{tpu_custom_call.1} parent=31 // pred_region
          %246 = dma.done %s238, 128
        $region36: #{tpu_custom_call.1} parent=31 // pred_fallthru
          _
        // Predicated region
        $region37: #{tpu_custom_call.1} parent=31 // pred_check
          %p247 = pneg %p66
        $region38: #{tpu_custom_call.1} parent=31 // pred_check_branch
          %249 = sbr.rel (%p247) target = $region40
        $region39: #{tpu_custom_call.1} parent=31 // pred_region
          %251 = dma.done [#allocation7], 128
        $region40: #{tpu_custom_call.1} parent=31 // pred_fallthru
          _
        // Predicated region
        $region41: #{tpu_custom_call.1} parent=31 // pred_check
          %p252 = pneg %p87
        $region42: #{tpu_custom_call.1} parent=31 // pred_check_branch
          %254 = sbr.rel (%p252) target = $region44
        $region43: #{tpu_custom_call.1} parent=31 // pred_region
          %256 = dma.done [#allocation7], 1280
        $region44: #{tpu_custom_call.1} parent=31 // pred_fallthru
          _
        %s257 = sand.u32 %s32, 1
        %s258 = scalar_lea.sflag [#allocation4], %s257
        %s259 = sand.u32 %s32, 1
        %s260 = smul.addr %s259, 8
        %s261 = scalar_lea.vmem [#allocation3], %s260
        %p262 = pneg %p45
        %p263 = pneg %p42
        %p264 = pneg %p66
        %p265 = pneg %p63
        %p266 = pneg %p87
        %p267 = pneg %p84
        %p268 = pneg %p113
        %p269 = pneg %p110
        %s270 = sand.u32 %s100, 1
        %s271 = scalar_lea.sflag [#allocation5], %s270
        %s272 = sand.u32 %s100, 1
        %s273 = smul.addr %s272, 16
        %s274 = scalar_lea.vmem [#allocation9], %s273
        %p275 = pneg %p139
        %p276 = pneg %p136
        %p277 = scmp.lt.s32.totalorder %s24, 1
        %s278 = scalar_select %p277, %s24, 1
        %s279 = smul.addr %s278, 8
        %s280 = scalar_lea.vmem %s4, %s279
        %p281 = pneg %p165
        %p282 = pneg %p162
        %p283 = scmp.lt.s32.totalorder %s24, 1
        %s284 = scalar_select %p283, %s24, 1
        %s285 = smul.addr %s284, 8
        %s286 = scalar_lea.vmem %s5, %s285
        %p287 = scmp.lt.s32.totalorder %s24, 1
        %s288 = scalar_select %p287, %s24, 1
        %s289 = smul.addr %s288, 8
        %s290 = scalar_lea.vmem %s4, %s289
        %p291 = scmp.lt.s32.totalorder %s24, 1
        %s292 = scalar_select %p291, %s24, 1
        %s293 = smul.addr %s292, 8
        %s294 = scalar_lea.vmem %s5, %s293
        %v295 = vld [vmem:[%s241] sm:$0xff]
        %297 = vst [vmem:[#allocation1] ss:$2 sm:$0xff] %v295
        %v298 = vld.sshfl [vmem:[#allocation1] sm:$0xff pattern:$0x75316420]
        %v299 = vld.sshfl [vmem:[#allocation1 + $0x8] sm:$0xff pattern:$0x75316420]
        %302 = vrot.lane.b32.xlu0 %v298, 17
        %v303 = vpop.permute.xlu0 %302
        %304 = vrot.lane.b32.xlu0 %v299, 17
        %v305 = vpop.permute.xlu0 %304
        %v306 = vlaneseq
        %v307 = vand.u32 %v306, 127
        %vm308 = vcmp.lt.s32.totalorder %v307, 17
        %v309 = vsel %vm308, %v303, %v305
        %v310 = vsel %vm308, %v305, %v303
        %311 = vst [vmem:[#allocation2] sm:$0xf] %v310
        %312 = vst [vmem:[#allocation2 + $0x8] sm:$0xf] %v309
        %313 = vst [vmem:[#allocation1] ss:$2 sm:$0xff] %v295
        %v314 = vld.sshfl [vmem:[#allocation1] sm:$0xff pattern:$0x75316420]
        %v315 = vld.sshfl [vmem:[#allocation1 + $0x8] sm:$0xff pattern:$0x75316420]
        %318 = vrot.lane.b32.xlu0 %v314, 16
        %v319 = vpop.permute.xlu0 %318
        %320 = vrot.lane.b32.xlu0 %v315, 16
        %v321 = vpop.permute.xlu0 %320
        %vm322 = vcmp.lt.s32.totalorder %v307, 16
        %v323 = vsel %vm322, %v319, %v321
        %v324 = vsel %vm322, %v321, %v319
        %v327 = vrot.slane %v324, 4
        %v328 = vrot.slane %v323, 4
        %331 = vst [vmem:[#allocation2] sm:$0xf0] %v327
        %332 = vst [vmem:[#allocation2 + $0x8] sm:$0xf0] %v328
        %333 = vst [vmem:[#allocation1] ss:$2 sm:$0xff] %v295
        %v334 = vld.sshfl [vmem:[#allocation1] sm:$0xff pattern:$0x75316420]
        %v335 = vld.sshfl [vmem:[#allocation1 + $0x8] sm:$0xff pattern:$0x75316420]
        %338 = vrot.lane.b32.xlu0 %v334, 15
        %v339 = vpop.permute.xlu0 %338
        %340 = vrot.lane.b32.xlu0 %v335, 15
        %v341 = vpop.permute.xlu0 %340
        %vm342 = vcmp.lt.s32.totalorder %v307, 15
        %v343 = vsel %vm342, %v339, %v341
        %v344 = vsel %vm342, %v341, %v339
        %345 = vst [vmem:[#allocation2 + $0x10] sm:$0xf] %v344
        %346 = vst [vmem:[#allocation2 + $0x18] sm:$0xf] %v343
        %347 = vst [vmem:[#allocation1] ss:$2 sm:$0xff] %v295
        %v348 = vld.sshfl [vmem:[#allocation1] sm:$0xff pattern:$0x75316420]
        %v349 = vld.sshfl [vmem:[#allocation1 + $0x8] sm:$0xff pattern:$0x75316420]
        %352 = vrot.lane.b32.xlu0 %v348, 1
        %v353 = vpop.permute.xlu0 %352
        %354 = vrot.lane.b32.xlu0 %v349, 1
        %v355 = vpop.permute.xlu0 %354
        %vm356 = vcmp.lt.s32.totalorder %v307, 1
        %v357 = vsel %vm356, %v353, %v355
        %v358 = vsel %vm356, %v355, %v353
        %v361 = vrot.slane %v358, 4
        %v362 = vrot.slane %v357, 4
        %365 = vst [vmem:[#allocation2 + $0x10] sm:$0xf0] %v361
        %366 = vst [vmem:[#allocation2 + $0x18] sm:$0xf0] %v362
        %367 = vst [vmem:[#allocation1] ss:$2 sm:$0xff] %v295
        %v368 = vld.sshfl [vmem:[#allocation1] sm:$0xff pattern:$0x75316420]
        %v369 = vld.sshfl [vmem:[#allocation1 + $0x8] sm:$0xff pattern:$0x75316420]
        %372 = vst [vmem:[#allocation2 + $0x20] sm:$0xf] %v368
        %373 = vst [vmem:[#allocation2 + $0x28] sm:$0xf] %v369
        %374 = vst [vmem:[#allocation1] ss:$2 sm:$0xff] %v295
        %v375 = vld.sshfl [vmem:[#allocation1] sm:$0xff pattern:$0x75316420]
        %v376 = vld.sshfl [vmem:[#allocation1 + $0x8] sm:$0xff pattern:$0x75316420]
        %379 = vrot.lane.b32.xlu0 %v375, 127
        %v380 = vpop.permute.xlu0 %379
        %381 = vrot.lane.b32.xlu0 %v376, 127
        %v382 = vpop.permute.xlu0 %381
        %vm383 = vcmp.lt.s32.totalorder %v307, 127
        %v384 = vsel %vm383, %v380, %v382
        %v385 = vsel %vm383, %v382, %v380
        %v388 = vrot.slane %v384, 4
        %v389 = vrot.slane %v385, 4
        %392 = vst [vmem:[#allocation2 + $0x20] sm:$0xf0] %v388
        %393 = vst [vmem:[#allocation2 + $0x28] sm:$0xf0] %v389
        %394 = vst [vmem:[#allocation1] ss:$2 sm:$0xff] %v295
        %v395 = vld.sshfl [vmem:[#allocation1] sm:$0xff pattern:$0x75316420]
        %v396 = vld.sshfl [vmem:[#allocation1 + $0x8] sm:$0xff pattern:$0x75316420]
        %399 = vrot.lane.b32.xlu0 %v395, 113
        %v400 = vpop.permute.xlu0 %399
        %401 = vrot.lane.b32.xlu0 %v396, 113
        %v402 = vpop.permute.xlu0 %401
        %vm403 = vcmp.lt.s32.totalorder %v307, 113
        %v404 = vsel %vm403, %v400, %v402
        %v405 = vsel %vm403, %v402, %v400
        %406 = vst [vmem:[#allocation2 + $0x30] sm:$0xf] %v404
        %407 = vst [vmem:[#allocation2 + $0x38] sm:$0xf] %v405
        %408 = vst [vmem:[#allocation1] ss:$2 sm:$0xff] %v295
        %v409 = vld.sshfl [vmem:[#allocation1] sm:$0xff pattern:$0x75316420]
        %v410 = vld.sshfl [vmem:[#allocation1 + $0x8] sm:$0xff pattern:$0x75316420]
        %413 = vrot.lane.b32.xlu0 %v409, 112
        %v414 = vpop.permute.xlu0 %413
        %415 = vrot.lane.b32.xlu0 %v410, 112
        %v416 = vpop.permute.xlu0 %415
        %vm417 = vcmp.lt.s32.totalorder %v307, 112
        %v418 = vsel %vm417, %v414, %v416
        %v419 = vsel %vm417, %v416, %v414
        %v422 = vrot.slane %v418, 4
        %v423 = vrot.slane %v419, 4
        %426 = vst [vmem:[#allocation2 + $0x30] sm:$0xf0] %v422
        %427 = vst [vmem:[#allocation2 + $0x38] sm:$0xf0] %v423
        %428 = vst [vmem:[#allocation1] ss:$2 sm:$0xff] %v295
        %v429 = vld.sshfl [vmem:[#allocation1] sm:$0xff pattern:$0x75316420]
        %v430 = vld.sshfl [vmem:[#allocation1 + $0x8] sm:$0xff pattern:$0x75316420]
        %433 = vrot.lane.b32.xlu0 %v429, 111
        %v434 = vpop.permute.xlu0 %433
        %435 = vrot.lane.b32.xlu0 %v430, 111
        %v436 = vpop.permute.xlu0 %435
        %vm437 = vcmp.lt.s32.totalorder %v307, 111
        %v438 = vsel %vm437, %v434, %v436
        %v439 = vsel %vm437, %v436, %v434
        %440 = vst [vmem:[#allocation2 + $0x40] sm:$0xf] %v438
        %441 = vst [vmem:[#allocation2 + $0x48] sm:$0xf] %v439
        %v442 = vld [vmem:[#allocation2] sm:$0xff]
        %v443 = vld [vmem:[#allocation2 + $0x8] sm:$0xff]
        %v444 = vld [vmem:[#allocation2 + $0x10] sm:$0xff]
        %v445 = vld [vmem:[#allocation2 + $0x18] sm:$0xff]
        %v446 = vld [vmem:[#allocation2 + $0x20] sm:$0xff]
        %v447 = vld [vmem:[#allocation2 + $0x28] sm:$0xff]
        %v448 = vld [vmem:[#allocation2 + $0x30] sm:$0xff]
        %v449 = vld [vmem:[#allocation2 + $0x38] sm:$0xff]
        %v450 = vld [vmem:[#allocation2 + $0x40] sm:$0xf]
        %v451 = vld [vmem:[#allocation2 + $0x48] sm:$0xf]
        %v452 = vld [vmem:[#allocation8] sm:$0xff]
        %v453 = vld [vmem:[#allocation8 + $0x8] sm:$0xff]
        %v454 = vld [vmem:[#allocation8 + $0x10] sm:$0xff]
        %v455 = vld [vmem:[#allocation8 + $0x18] sm:$0xff]
        %v456 = vld [vmem:[#allocation8 + $0x20] sm:$0xff]
        %v457 = vld [vmem:[#allocation8 + $0x28] sm:$0xff]
        %v458 = vld [vmem:[#allocation8 + $0x30] sm:$0xff]
        %v459 = vld [vmem:[#allocation8 + $0x38] sm:$0xff]
        %v460 = vld [vmem:[#allocation8 + $0x40] sm:$0xf]
        %v461 = vld [vmem:[#allocation8 + $0x48] sm:$0xf]
        %v462 = vmul.f32 %v442, %v452
        %v463 = vmul.f32 %v443, %v453
        %v464 = vmul.f32 %v444, %v454
        %v465 = vmul.f32 %v445, %v455
        %v466 = vmul.f32 %v446, %v456
        %v467 = vmul.f32 %v447, %v457
        %v468 = vmul.f32 %v448, %v458
        %v469 = vmul.f32 %v449, %v459
        %v470 = vmul.f32 %v450, %v460
        %v471 = vmul.f32 %v451, %v461
        %v472 = vld [vmem:[#allocation6] sm:$0xff]
        %vm473 = vcmask 293888
        %v475 = vsel %vm473, %v472, 0
        %vm477 = vcmask 1043456
        %v479 = vsel %vm477, %v470, 0
        %v482 = vsel %vm477, %v471, 0
        %484 = vmatpush.msra.mxu0 0.0
        %485 = vmatpush.msra.mxu0 0.0
        %486 = vmatpush.msra.mxu0 0.0
        %487 = vmatpush.msra.mxu0 0.0
        %488 = vmatpush.msra.mxu0 0.0
        %489 = vmatpush.msra.mxu0 0.0
        %490 = vmatpush.msra.mxu0 0.0
        %491 = vmatpush.msra.mxu0 0.0
        %492 = vmatpush.msra.mxu0 0.0
        %493 = vmatpush.msra.mxu0 0.0
        %494 = vmatpush.msra.mxu0 0.0
        %495 = vmatpush.msra.mxu0 %v479
        %496 = vmatpush.msra.mxu0 %v468
        %497 = vmatpush.msra.mxu0 %v466
        %498 = vmatpush.msra.mxu0 %v464
        %499 = vmatpush.msra.mxu0 %v462
        %500 = vmatmul.f32.gmra.mxu0 %v475
        %v501 = vpop.f32.mrf.mxu0
        %v502 = vadd.f32 0.0, %v501
        %503 = vdwg.mxu0
        %504 = vmatpush.msra.mxu0 0.0
        %505 = vmatpush.msra.mxu0 0.0
        %506 = vmatpush.msra.mxu0 0.0
        %507 = vmatpush.msra.mxu0 0.0
        %508 = vmatpush.msra.mxu0 0.0
        %509 = vmatpush.msra.mxu0 0.0
        %510 = vmatpush.msra.mxu0 0.0
        %511 = vmatpush.msra.mxu0 0.0
        %512 = vmatpush.msra.mxu0 0.0
        %513 = vmatpush.msra.mxu0 0.0
        %514 = vmatpush.msra.mxu0 0.0
        %515 = vmatpush.msra.mxu0 %v482
        %516 = vmatpush.msra.mxu0 %v469
        %517 = vmatpush.msra.mxu0 %v467
        %518 = vmatpush.msra.mxu0 %v465
        %519 = vmatpush.msra.mxu0 %v463
        %520 = vmatmul.f32.gmra.mxu0 %v475
        %v521 = vpop.f32.mrf.mxu0
        %v522 = vadd.f32 0.0, %v521
        %523 = vdwg.mxu0
        %524 = vst [vmem:[%s274] sm:$0xff] %v502
        %525 = vst [vmem:[%s274 + $0x8] sm:$0xff] %v522
        %v526 = vadd.f32 %v502, %v522
        %527 = vadd.xlane.f32.xlu0 %v526
        %v528 = vpop.xlane.xlu0 %527
        %vm529 = vcmask 7168
        %530 = vst.msk [vmem:[%s290] sm:$0xff] %vm529, %v528
        %v531 = vmul.f32 %v502, %v502
        %v532 = vmul.f32 %v522, %v522
        %v533 = vadd.f32 %v531, %v532
        %534 = vadd.xlane.f32.xlu0 %v533
        %v535 = vpop.xlane.xlu0 %534
        %536 = vst.msk [vmem:[%s294] sm:$0xff] %vm529, %v535
        %s537 = sand.u32 %s100, 1
        %s538 = scalar_lea.sflag [#allocation5], %s537
        %s539 = sand.u32 %s100, 1
        %s540 = smul.addr %s539, 16
        %s541 = scalar_lea.vmem [#allocation9], %s540
        %p542 = scmp.lt.s32.totalorder %s24, 1
        %s543 = scalar_select %p542, %s24, 1
        %s544 = smul.addr %s543, 8
        %s545 = scalar_lea.vmem %s4, %s544
        %p546 = scmp.lt.s32.totalorder %s24, 1
        %s547 = scalar_select %p546, %s24, 1
        %s548 = smul.addr %s547, 8
        %s549 = scalar_lea.vmem %s5, %s548
        // Predicated region
        $region45: #{tpu_custom_call.1} parent=31 // pred_check
          %p550 = pneg %p110
        $region46: #{tpu_custom_call.1} parent=31 // pred_check_branch
          %552 = sbr.rel (%p550) target = $region48
        $region47: #{tpu_custom_call.1} parent=31 // pred_region
          %554 = vsyncadd %s538, 0
          %s555 = smul.addr %s24, 2
          %s556 = smul.addr %s555, 8
          %s557 = scalar_lea.hbm %s3, %s556
          %s559 = sshll.u32 %s541, 4
          %s560 = int_to_ptr.vmem [resolvable:$true] %s559
          %s561 = sshll.u32 %s557, 4
          %s562 = int_to_ptr.hbm [resolvable:$true] %s561
          %564 = dma.vmem_to_hbm [thread:$0]  %s560, 256, %s562, %s538
        $region48: #{tpu_custom_call.1} parent=31 // pred_fallthru
          _
        // Predicated region
        $region49: #{tpu_custom_call.1} parent=31 // pred_check
          %p565 = pneg %p136
        $region50: #{tpu_custom_call.1} parent=31 // pred_check_branch
          %567 = sbr.rel (%p565) target = $region52
        $region51: #{tpu_custom_call.1} parent=31 // pred_region
          _
        $region52: #{tpu_custom_call.1} parent=31 // pred_fallthru
          _
        // Predicated region
        $region53: #{tpu_custom_call.1} parent=31 // pred_check
          %p568 = pneg %p162
        $region54: #{tpu_custom_call.1} parent=31 // pred_check_branch
          %570 = sbr.rel (%p568) target = $region56
        $region55: #{tpu_custom_call.1} parent=31 // pred_region
          _
        $region56: #{tpu_custom_call.1} parent=31 // pred_fallthru
          _
      $region32: #{tpu_custom_call.1} parent=5 // pred_fallthru
        _
      %p571 = scmp.le.s32.totalorder 2, %s19
      // Predicated region
      $region57: #{tpu_custom_call.1} parent=5 // pred_check
        %p572 = pneg %p571
      $region58: #{tpu_custom_call.1} parent=5 // pred_check_branch
        %574 = sbr.rel (%p572) target = $region60
      $region59: #{tpu_custom_call.1} parent=5 // pred_region
        %s575 = ssub.s32 %s19, 2
        // Predicated region
        $region61: #{tpu_custom_call.1} parent=59 // pred_check
          %p576 = pneg %p116
        $region62: #{tpu_custom_call.1} parent=59 // pred_check_branch
          %578 = sbr.rel (%p576) target = $region64
        $region63: #{tpu_custom_call.1} parent=59 // pred_region
          %s579 = sand.u32 %s101, 1
          %s580 = scalar_lea.sflag [#allocation5], %s579
          %s581 = sand.u32 %s101, 1
          %s582 = smul.addr %s581, 16
          %s583 = scalar_lea.vmem [#allocation9], %s582
          %585 = dma.done %s580, 256
        $region64: #{tpu_custom_call.1} parent=59 // pred_fallthru
          _
        // Predicated region
        $region65: #{tpu_custom_call.1} parent=59 // pred_check
          %p586 = pneg %p142
        $region66: #{tpu_custom_call.1} parent=59 // pred_check_branch
          %588 = sbr.rel (%p586) target = $region68
        $region67: #{tpu_custom_call.1} parent=59 // pred_region
          %p589 = scmp.lt.s32.totalorder %s25, 1
          %s590 = scalar_select %p589, %s25, 1
          %s591 = smul.addr %s590, 8
          %s592 = scalar_lea.vmem %s4, %s591
        $region68: #{tpu_custom_call.1} parent=59 // pred_fallthru
          _
        // Predicated region
        $region69: #{tpu_custom_call.1} parent=59 // pred_check
          %p593 = pneg %p168
        $region70: #{tpu_custom_call.1} parent=59 // pred_check_branch
          %595 = sbr.rel (%p593) target = $region72
        $region71: #{tpu_custom_call.1} parent=59 // pred_region
          %p596 = scmp.lt.s32.totalorder %s25, 1
          %s597 = scalar_select %p596, %s25, 1
          %s598 = smul.addr %s597, 8
          %s599 = scalar_lea.vmem %s5, %s598
        $region72: #{tpu_custom_call.1} parent=59 // pred_fallthru
          _
      $region60: #{tpu_custom_call.1} parent=5 // pred_fallthru
        _
    $region6: #{tpu_custom_call.1} parent=1 // loop_footer
      %s23 = sadd.s32 1, %s19
    $region7: #{tpu_custom_call.1} parent=1 // loop_footer_branch
      %18 = sbr.rel target = $region3
    $region8: #{tpu_custom_call.1} parent=1 // loop_exit
      _
    %600 = vsyncpa [#allocation4], 1
    %s601 = scalar_lea.sflag [#allocation4], 1
    %602 = vsyncpa %s601, 1
    %603 = vsyncpa [#allocation7], 1
    %604 = vsyncpa [#allocation5], 1
    %s605 = scalar_lea.sflag [#allocation5], 1
    %606 = vsyncpa %s605, 1

</llo_original>
